<compile_context>
chip_gen: v5e
topology: v5e:2x2
jax: 0.10.0
libtpu: 0.0.40
codegen_flags: <defaults>
</compile_context>

<pallas_src>
import functools

import jax
import jax.numpy as jnp
from jax.experimental import pallas as pl
from jax.experimental.pallas import tpu as pltpu


# ----------------------------------------------------------------------------
# Pallas kernel: one grid step processes nb batch*temporal elements (on lanes).
# ----------------------------------------------------------------------------
def _charcnn_kernel(x_ref, w_ref, mask_ref, bias_ref, o_ref, *,
                    kernel_width_max, l_out, masked_windows):
    x = x_ref[...]                                  # (L_pad, D, nb) bf16, nb on lanes
    d = x.shape[1]
    nb = x.shape[2]
    w = w_ref[...]                                  # (F, kw_max*D) bf16

    def window_scores(l):
        # Static leading-dim slice; the reshape merges the kw_max tap tiles onto
        # sublanes (tile-aligned: D is one bf16 sublane tile), so it is free.
        xwin = x[l:l + kernel_width_max].reshape(kernel_width_max * d, nb)
        # Flipped orientation: F on sublanes, batch on output lanes (lane-dense).
        z = jnp.dot(w, xwin, preferred_element_type=jnp.float32)   # (F, nb) f32
        if l in masked_windows:                     # static: spurious positions only
            z = z + mask_ref[:, l:l + 1]            # (F,1) -1e30/0, pre-max
        return z

    # Max over window positions first (monotonic sigmoid commutes with max).
    m = window_scores(0)
    for l in range(1, l_out):
        m = jnp.maximum(m, window_scores(l))

    # Bias after the max; sigmoid only on the reduced (F, nb) slab; f32 epilogue.
    o_ref[...] = jax.nn.sigmoid(m + bias_ref[...])  # lane-dense (F, nb) store


# ----------------------------------------------------------------------------
# Wrapper: weight packing, batching / padding, pallas_call.
# ----------------------------------------------------------------------------
def _round_up(v, m):
    return (v + m - 1) // m * m


def charcnn_forward(x_nchw, params, kernel_widths=(2, 3), kernel_nums=(2, 2),
                    *, block_n=128, compute_dtype=jnp.bfloat16):
    """x_nchw: (N, 1, L, D) float32 (PyTorch NCHW, N = batch*temporal).
    Returns (N, num_filters, 1) float32, matching the PyTorch module."""
    N, C_in, L, D = x_nchw.shape
    assert C_in == 1, "charcnn uses Conv2d(in_channels=1, ...)"

    kw_max = max(kernel_widths)
    kw_min = min(kernel_widths)
    assert L >= kw_max, "input length must cover the widest filter"
    l_out = L - kw_min + 1                      # common number of window positions
    L_pad = L + (kw_max - kw_min)               # pad x so every width sees l_out windows
    num_filters = sum(kernel_nums[i] * kw for i, kw in enumerate(kernel_widths))

    # --- pack every filter width into one (F, kw_max*D) weight --------------
    # Taps beyond a filter's width are zero; spurious window positions of the
    # wider filters are neutralized by a -1e30 additive mask applied pre-max.
    w_rows, b_rows, valid_lens = [], [], []
    for idx, kw in enumerate(kernel_widths):
        w, b = params[idx]                      # (kw, D, c_out), (1, c_out)
        c_out = kernel_nums[idx] * kw
        assert w.shape == (kw, D, c_out) and b.shape == (1, c_out)
        w_full = jnp.zeros((kw_max, D, c_out), jnp.float32).at[:kw].set(w)
        w_rows.append(jnp.transpose(w_full.reshape(kw_max * D, c_out)))   # (c_out, kw_max*D)
        b_rows.append(b.reshape(c_out))
        valid_lens.extend([L - kw + 1] * c_out)                           # static python ints
    w_packed = jnp.concatenate(w_rows, axis=0).astype(compute_dtype)      # (F, kw_max*D)
    bias = jnp.concatenate(b_rows)[:, None].astype(jnp.float32)           # (F, 1)

    pos = jnp.arange(l_out, dtype=jnp.int32)[None, :]                     # (1, l_out)
    valid = jnp.asarray(valid_lens, jnp.int32)[:, None]                   # (F, 1)
    mask = jnp.where(pos < valid, 0.0, -1e30).astype(jnp.float32)         # (F, l_out)
    # Statically-known spurious window positions (only these get the mask add).
    masked_windows = tuple(range(min(valid_lens), l_out))

    # --- batch nb elements per grid step; nb sits on the lane axis ----------
    nb = _round_up(max(1, min(block_n, N)), 128)
    n_pad = _round_up(N, nb)

    # Single fused pad + transpose + cast pass over x: (N,L,D) -> (L_pad, D, n_pad).
    x = x_nchw[:, 0]                                                      # (N, L, D)
    x = jnp.pad(x, ((0, n_pad - N), (0, L_pad - L), (0, 0)))
    x = jnp.transpose(x, (1, 2, 0)).astype(compute_dtype)                 # (L_pad, D, n_pad)

    kernel = functools.partial(_charcnn_kernel,
                               kernel_width_max=kw_max, l_out=l_out,
                               masked_windows=masked_windows)
    out = pl.pallas_call(
        kernel,
        out_shape=jax.ShapeDtypeStruct((num_filters, n_pad), jnp.float32),
        grid=(n_pad // nb,),
        in_specs=[
            pl.BlockSpec((L_pad, D, nb), lambda i: (0, 0, i)),            # x slab (lane-dense)
            pl.BlockSpec((num_filters, kw_max * D), lambda i: (0, 0)),    # packed weight
            pl.BlockSpec((num_filters, l_out), lambda i: (0, 0)),         # spurious-window mask
            pl.BlockSpec((num_filters, 1), lambda i: (0, 0)),             # bias (post-max)
        ],
        out_specs=pl.BlockSpec((num_filters, nb), lambda i: (0, i)),      # lane-dense out
        compiler_params=pltpu.CompilerParams(dimension_semantics=("parallel",)),
    )(x, w_packed, mask, bias)

    # Tiny (F, N) -> (N, F, 1) transpose to match PyTorch's output layout.
    return jnp.transpose(out[:, :N])[:, :, None]


# ----------------------------------------------------------------------------
# Deterministic parameter init (Conv2d-like uniform init, synthetic weights).
# ----------------------------------------------------------------------------
def init_charcnn_params(key, char_dim, kernel_widths=(2, 3), kernel_nums=(2, 2)):
    params = []
    for idx, kw in enumerate(kernel_widths):
        c_out = kernel_nums[idx] * kw
        key, kw_key, kb_key = jax.random.split(key, 3)
        fan_in = 1 * kw * char_dim
        bound = 1.0 / (fan_in ** 0.5)
        # PyTorch Conv2d weight is (C_out, 1, kw, D); store as (kw, D, C_out).
        w_torch_layout = jax.random.uniform(
            kw_key, (c_out, 1, kw, char_dim), jnp.float32, -bound, bound)
        w = jnp.transpose(w_torch_layout[:, 0, :, :], (1, 2, 0))          # (kw, D, C_out)
        b = jax.random.uniform(kb_key, (1, c_out), jnp.float32, -bound, bound)
        params.append((w, b))
    return params


# ----------------------------------------------------------------------------
# Pure-JAX f32 reference (self-check against the Pallas kernel).
# ----------------------------------------------------------------------------
def charcnn_reference(x_nchw, params, kernel_widths=(2, 3), kernel_nums=(2, 2)):
    x = x_nchw[:, 0, :, :]                    # (N, L, D)
    N, L, D = x.shape
    parts = []
    for idx, kw in enumerate(kernel_widths):
        w, b = params[idx]
        l_out = L - kw + 1
        conv = jnp.zeros((N, l_out, w.shape[-1]), jnp.float32)
        for j in range(kw):
            conv = conv + jnp.einsum("nld,dc->nlc", x[:, j:j + l_out, :], w[j])
        act = jax.nn.sigmoid(conv + b[None])
        parts.append(jnp.max(act, axis=1))    # (N, C_out)
    return jnp.concatenate(parts, axis=-1)[:, :, None]   # (N, num_filters, 1)


if __name__ == "__main__":
    kernel_widths = (2, 3)
    kernel_nums = (2, 2)
    char_dim = 16
    max_char_len = 12
    batch, temporal = 2, 128                  # N = 256 -> 2 parallel grid steps of 128
    N = batch * temporal

    key = jax.random.PRNGKey(0)
    key, x_key = jax.random.split(key)
    # PyTorch NCHW conv input: (N, 1, max_char_len, char_dim)
    x = jax.random.normal(x_key, (N, 1, max_char_len, char_dim), jnp.float32)

    params = init_charcnn_params(key, char_dim, kernel_widths, kernel_nums)

    out = charcnn_forward(x, params, kernel_widths, kernel_nums)
    out = jax.block_until_ready(out)

    ref = charcnn_reference(x, params, kernel_widths, kernel_nums)
    num_filters = sum(n * w for w, n in zip(kernel_widths, kernel_nums))
    assert out.shape == (N, num_filters, 1)
    # bf16 matmul inputs vs f32 reference: sigmoid outputs agree to ~1e-3; 3e-2 is ample.
    assert jnp.allclose(out, ref, atol=3e-2, rtol=0.0), "Pallas output mismatch vs JAX reference"

    print("KERNEL_OK")
</pallas_src>

<mosaic_0001>
module attributes {stable_mosaic.version = 11 : i64} {
  func.func @_charcnn_kernel(%arg0: i32, %arg1: memref<13x16x128xbf16, #tpu.memory_space<vmem>>, %arg2: memref<10x48xbf16, #tpu.memory_space<vmem>>, %arg3: memref<10x11xf32, #tpu.memory_space<vmem>>, %arg4: memref<10x1xf32, #tpu.memory_space<vmem>>, %arg5: memref<10x128xf32, #tpu.memory_space<vmem>>) attributes {dimension_semantics = [#tpu.dimension_semantics<parallel>], iteration_bounds = array<i64: 2>, scalar_prefetch = 0 : i64, scratch_operands = 0 : i64, tpu.core_type = #tpu.core_type<tc>, window_params = [{transform_indices = @transform_0, window_bounds = array<i64: 13, 16, 128>}, {pipeline_mode = #tpu.pipeline_mode<synchronous>, transform_indices = @transform_1, window_bounds = array<i64: 10, 48>}, {pipeline_mode = #tpu.pipeline_mode<synchronous>, transform_indices = @transform_2, window_bounds = array<i64: 10, 11>}, {pipeline_mode = #tpu.pipeline_mode<synchronous>, transform_indices = @transform_3, window_bounds = array<i64: 10, 1>}, {transform_indices = @transform_4, window_bounds = array<i64: 10, 128>}]} {
    %c0 = arith.constant 0 : index
    %c0_0 = arith.constant 0 : index
    %c0_1 = arith.constant 0 : index
    %0 = vector.load %arg1[%c0, %c0_0, %c0_1] : memref<13x16x128xbf16, #tpu.memory_space<vmem>>, vector<13x16x128xbf16>
    %c0_2 = arith.constant 0 : index
    %c0_3 = arith.constant 0 : index
    %1 = vector.load %arg2[%c0_2, %c0_3] : memref<10x48xbf16, #tpu.memory_space<vmem>>, vector<10x48xbf16>
    %2 = vector.extract_strided_slice %0 {offsets = [0, 0, 0], sizes = [3, 16, 128], strides = [1, 1, 1]} : vector<13x16x128xbf16> to vector<3x16x128xbf16>
    %3 = vector.shape_cast %2 : vector<3x16x128xbf16> to vector<48x128xbf16>
    %cst = arith.constant dense<0.000000e+00> : vector<10x128xf32>
    %4 = tpu.matmul %1, %3, %cst {dimension_numbers = #tpu.dot_dimension_numbers<[1], [0], [0], [1], [0, 0, 1, 1], [], []>} : vector<10x48xbf16>, vector<48x128xbf16>, vector<10x128xf32> -> vector<10x128xf32>
    %5 = vector.extract_strided_slice %0 {offsets = [1, 0, 0], sizes = [3, 16, 128], strides = [1, 1, 1]} : vector<13x16x128xbf16> to vector<3x16x128xbf16>
    %6 = vector.shape_cast %5 : vector<3x16x128xbf16> to vector<48x128xbf16>
    %cst_4 = arith.constant dense<0.000000e+00> : vector<10x128xf32>
    %7 = tpu.matmul %1, %6, %cst_4 {dimension_numbers = #tpu.dot_dimension_numbers<[1], [0], [0], [1], [0, 0, 1, 1], [], []>} : vector<10x48xbf16>, vector<48x128xbf16>, vector<10x128xf32> -> vector<10x128xf32>
    %8 = arith.maximumf %4, %7 : vector<10x128xf32>
    %9 = vector.extract_strided_slice %0 {offsets = [2, 0, 0], sizes = [3, 16, 128], strides = [1, 1, 1]} : vector<13x16x128xbf16> to vector<3x16x128xbf16>
    %10 = vector.shape_cast %9 : vector<3x16x128xbf16> to vector<48x128xbf16>
    %cst_5 = arith.constant dense<0.000000e+00> : vector<10x128xf32>
    %11 = tpu.matmul %1, %10, %cst_5 {dimension_numbers = #tpu.dot_dimension_numbers<[1], [0], [0], [1], [0, 0, 1, 1], [], []>} : vector<10x48xbf16>, vector<48x128xbf16>, vector<10x128xf32> -> vector<10x128xf32>
    %12 = arith.maximumf %8, %11 : vector<10x128xf32>
    %13 = vector.extract_strided_slice %0 {offsets = [3, 0, 0], sizes = [3, 16, 128], strides = [1, 1, 1]} : vector<13x16x128xbf16> to vector<3x16x128xbf16>
    %14 = vector.shape_cast %13 : vector<3x16x128xbf16> to vector<48x128xbf16>
    %cst_6 = arith.constant dense<0.000000e+00> : vector<10x128xf32>
    %15 = tpu.matmul %1, %14, %cst_6 {dimension_numbers = #tpu.dot_dimension_numbers<[1], [0], [0], [1], [0, 0, 1, 1], [], []>} : vector<10x48xbf16>, vector<48x128xbf16>, vector<10x128xf32> -> vector<10x128xf32>
    %16 = arith.maximumf %12, %15 : vector<10x128xf32>
    %17 = vector.extract_strided_slice %0 {offsets = [4, 0, 0], sizes = [3, 16, 128], strides = [1, 1, 1]} : vector<13x16x128xbf16> to vector<3x16x128xbf16>
    %18 = vector.shape_cast %17 : vector<3x16x128xbf16> to vector<48x128xbf16>
    %cst_7 = arith.constant dense<0.000000e+00> : vector<10x128xf32>
    %19 = tpu.matmul %1, %18, %cst_7 {dimension_numbers = #tpu.dot_dimension_numbers<[1], [0], [0], [1], [0, 0, 1, 1], [], []>} : vector<10x48xbf16>, vector<48x128xbf16>, vector<10x128xf32> -> vector<10x128xf32>
    %20 = arith.maximumf %16, %19 : vector<10x128xf32>
    %21 = vector.extract_strided_slice %0 {offsets = [5, 0, 0], sizes = [3, 16, 128], strides = [1, 1, 1]} : vector<13x16x128xbf16> to vector<3x16x128xbf16>
    %22 = vector.shape_cast %21 : vector<3x16x128xbf16> to vector<48x128xbf16>
    %cst_8 = arith.constant dense<0.000000e+00> : vector<10x128xf32>
    %23 = tpu.matmul %1, %22, %cst_8 {dimension_numbers = #tpu.dot_dimension_numbers<[1], [0], [0], [1], [0, 0, 1, 1], [], []>} : vector<10x48xbf16>, vector<48x128xbf16>, vector<10x128xf32> -> vector<10x128xf32>
    %24 = arith.maximumf %20, %23 : vector<10x128xf32>
    %25 = vector.extract_strided_slice %0 {offsets = [6, 0, 0], sizes = [3, 16, 128], strides = [1, 1, 1]} : vector<13x16x128xbf16> to vector<3x16x128xbf16>
    %26 = vector.shape_cast %25 : vector<3x16x128xbf16> to vector<48x128xbf16>
    %cst_9 = arith.constant dense<0.000000e+00> : vector<10x128xf32>
    %27 = tpu.matmul %1, %26, %cst_9 {dimension_numbers = #tpu.dot_dimension_numbers<[1], [0], [0], [1], [0, 0, 1, 1], [], []>} : vector<10x48xbf16>, vector<48x128xbf16>, vector<10x128xf32> -> vector<10x128xf32>
    %28 = arith.maximumf %24, %27 : vector<10x128xf32>
    %29 = vector.extract_strided_slice %0 {offsets = [7, 0, 0], sizes = [3, 16, 128], strides = [1, 1, 1]} : vector<13x16x128xbf16> to vector<3x16x128xbf16>
    %30 = vector.shape_cast %29 : vector<3x16x128xbf16> to vector<48x128xbf16>
    %cst_10 = arith.constant dense<0.000000e+00> : vector<10x128xf32>
    %31 = tpu.matmul %1, %30, %cst_10 {dimension_numbers = #tpu.dot_dimension_numbers<[1], [0], [0], [1], [0, 0, 1, 1], [], []>} : vector<10x48xbf16>, vector<48x128xbf16>, vector<10x128xf32> -> vector<10x128xf32>
    %32 = arith.maximumf %28, %31 : vector<10x128xf32>
    %33 = vector.extract_strided_slice %0 {offsets = [8, 0, 0], sizes = [3, 16, 128], strides = [1, 1, 1]} : vector<13x16x128xbf16> to vector<3x16x128xbf16>
    %34 = vector.shape_cast %33 : vector<3x16x128xbf16> to vector<48x128xbf16>
    %cst_11 = arith.constant dense<0.000000e+00> : vector<10x128xf32>
    %35 = tpu.matmul %1, %34, %cst_11 {dimension_numbers = #tpu.dot_dimension_numbers<[1], [0], [0], [1], [0, 0, 1, 1], [], []>} : vector<10x48xbf16>, vector<48x128xbf16>, vector<10x128xf32> -> vector<10x128xf32>
    %36 = arith.maximumf %32, %35 : vector<10x128xf32>
    %37 = vector.extract_strided_slice %0 {offsets = [9, 0, 0], sizes = [3, 16, 128], strides = [1, 1, 1]} : vector<13x16x128xbf16> to vector<3x16x128xbf16>
    %38 = vector.shape_cast %37 : vector<3x16x128xbf16> to vector<48x128xbf16>
    %cst_12 = arith.constant dense<0.000000e+00> : vector<10x128xf32>
    %39 = tpu.matmul %1, %38, %cst_12 {dimension_numbers = #tpu.dot_dimension_numbers<[1], [0], [0], [1], [0, 0, 1, 1], [], []>} : vector<10x48xbf16>, vector<48x128xbf16>, vector<10x128xf32> -> vector<10x128xf32>
    %40 = arith.maximumf %36, %39 : vector<10x128xf32>
    %41 = vector.extract_strided_slice %0 {offsets = [10, 0, 0], sizes = [3, 16, 128], strides = [1, 1, 1]} : vector<13x16x128xbf16> to vector<3x16x128xbf16>
    %42 = vector.shape_cast %41 : vector<3x16x128xbf16> to vector<48x128xbf16>
    %cst_13 = arith.constant dense<0.000000e+00> : vector<10x128xf32>
    %43 = tpu.matmul %1, %42, %cst_13 {dimension_numbers = #tpu.dot_dimension_numbers<[1], [0], [0], [1], [0, 0, 1, 1], [], []>} : vector<10x48xbf16>, vector<48x128xbf16>, vector<10x128xf32> -> vector<10x128xf32>
    %c0_14 = arith.constant 0 : index
    %c10 = arith.constant 10 : index
    %44 = vector.load %arg3[%c0_14, %c10] : memref<10x11xf32, #tpu.memory_space<vmem>>, vector<10x1xf32>
    %45 = vector.broadcast %44 : vector<10x1xf32> to vector<10x128xf32>
    %46 = arith.addf %43, %45 : vector<10x128xf32>
    %47 = arith.maximumf %40, %46 : vector<10x128xf32>
    %c0_15 = arith.constant 0 : index
    %c0_16 = arith.constant 0 : index
    %48 = vector.load %arg4[%c0_15, %c0_16] : memref<10x1xf32, #tpu.memory_space<vmem>>, vector<10x1xf32>
    %49 = vector.broadcast %48 : vector<10x1xf32> to vector<10x128xf32>
    %50 = arith.addf %47, %49 : vector<10x128xf32>
    %51 = arith.negf %50 : vector<10x128xf32>
    %52 = math.exp %51 : vector<10x128xf32>
    %cst_17 = arith.constant 1.000000e+00 : f32
    %53 = vector.broadcast %cst_17 : f32 to vector<10x128xf32>
    %54 = arith.addf %53, %52 : vector<10x128xf32>
    %55 = arith.divf %53, %54 : vector<10x128xf32>
    %c0_18 = arith.constant 0 : index
    %c0_19 = arith.constant 0 : index
    %56 = vector.load %arg5[%c0_18, %c0_19] : memref<10x128xf32, #tpu.memory_space<vmem>>, vector<10x128xf32>
    tpu.vector_store %arg5[%c0_18, %c0_19], %55 {strides = array<i32>} : memref<10x128xf32, #tpu.memory_space<vmem>>, vector<10x128xf32>,
    return
  }
  func.func @transform_0(%arg0: i32) -> (i32, i32, i32) {
    %c0_i32 = arith.constant 0 : i32
    %c0_i32_0 = arith.constant 0 : i32
    %c0_i32_1 = arith.constant 0 : i32
    return %c0_i32, %c0_i32_0, %arg0 : i32, i32, i32
  }
  func.func @transform_1(%arg0: i32) -> (i32, i32) {
    %c0_i32 = arith.constant 0 : i32
    %c0_i32_0 = arith.constant 0 : i32
    %c0_i32_1 = arith.constant 0 : i32
    return %c0_i32, %c0_i32_0 : i32, i32
  }
  func.func @transform_2(%arg0: i32) -> (i32, i32) {
    %c0_i32 = arith.constant 0 : i32
    %c0_i32_0 = arith.constant 0 : i32
    %c0_i32_1 = arith.constant 0 : i32
    return %c0_i32, %c0_i32_0 : i32, i32
  }
  func.func @transform_3(%arg0: i32) -> (i32, i32) {
    %c0_i32 = arith.constant 0 : i32
    %c0_i32_0 = arith.constant 0 : i32
    %c0_i32_1 = arith.constant 0 : i32
    return %c0_i32, %c0_i32_0 : i32, i32
  }
  func.func @transform_4(%arg0: i32) -> (i32, i32) {
    %c0_i32 = arith.constant 0 : i32
    %c0_i32_0 = arith.constant 0 : i32
    return %c0_i32, %arg0 : i32, i32
  }
}

</mosaic_0001>

<llo_original>
// kernel: tpu_custom_call.1
$region0: #{tpu_custom_call.1}
  #allocation0 [shape = 'u32[]', space=smem, size = 0x4, offset = 0x4, fixed_abs, tag = 'smem constant byte address 0x4 - core index']
  #allocation1 [shape = 'u32[72,128]{1,0:T(1,128)}', space=vmem, size = 0x9000, scoped, tag = 'internal scratch']
  %s0 = inlined_call_operand.hbm [shape: bf16[13,16,256], index: 0, kind: input, shape index: {}]
  %s1 = inlined_call_operand.hbm [shape: bf16[10,48], index: 1, kind: input, shape index: {}]
  %s2 = inlined_call_operand.vmem [shape: f32[10,11], index: 2, kind: input, shape index: {}]
  %s3 = inlined_call_operand.vmem [shape: f32[10,1], index: 3, kind: input, shape index: {}]
  %s4 = inlined_call_operand.hbm [shape: f32[10,256], index: 4, kind: output, shape index: {}]
  %s5 = sld [smem:[#allocation0]]
  $region57: #{tpu_custom_call.1} parent=0
    _
  %s7 = ssub.s32 1, %s5
  %s8 = scalar_select 0, %s7, %s5
  $region1: #{tpu_custom_call.1} parent=0
    #allocation2 [shape = 'u8[106496]{0}', space=vmem, size = 0x1a000, scoped, tag = 'input window, operand 0']
    #allocation3 [shape = 's32[2]{0}', space=sflag, size = 0x8, scoped, tag = 'scoped memory for tpu_custom_call.1']
    #allocation4 [shape = 's32[2]{0}', space=sflag, size = 0x8, scoped, tag = 'scoped memory for tpu_custom_call.1']
    #allocation5 [shape = 'u8[4096]{0}', space=vmem, size = 0x1000, scoped, tag = 'input window, operand 1, single buffered']
    #allocation6 [shape = 's32[1]{0}', space=sflag, size = 0x4, scoped, tag = 'scoped memory for tpu_custom_call.1']
    #allocation7 [shape = 'u8[16384]{0}', space=vmem, size = 0x4000, scoped, tag = 'output window, operand 0']
    %9 = vsyncpa [#allocation3], 0
    %s10 = scalar_lea.sflag [#allocation3], 1
    %11 = vsyncpa %s10, 0
    %12 = vsyncpa [#allocation6], 0
    %13 = vsyncpa [#allocation4], 0
    %s14 = scalar_lea.sflag [#allocation4], 1
    %15 = vsyncpa %s14, 0
    loop: start=0, step=1, limit=4
    $region2: #{tpu_custom_call.1} parent=1 // loop_pre_header
      _
    $region3: #{tpu_custom_call.1} parent=1 // loop_header
      %s17 = sphi 0, %s21
      %p18 = scmp.ge.s32.totalorder %s17, 4
      %s27 = sphi 0, %s29
      %s30 = sphi 0, %s27
      %s31 = sphi 0, %s30
      %s47 = sphi 0, %s31
      %s51 = sphi 0, %s51
      %s53 = sphi 0, %s51
      %s54 = sphi 0, %s53
      %s68 = sphi 0, %s54
      %s72 = sphi 0, %s72
      %s74 = sphi 0, %s72
      %s75 = sphi 0, %s74
      %s89 = sphi 0, %s75
      %s93 = sphi 0, %s93
      %s95 = sphi 0, %s93
      %s96 = sphi 0, %s95
      %s110 = sphi 0, %s96
      %s116 = sphi 0, %s118
      %s119 = sphi 0, %s116
      %s120 = sphi 0, %s119
      %s136 = sphi 0, %s120
    $region4: #{tpu_custom_call.1} parent=1 // loop_header_branch
      %20 = sbr.rel (%p18) target = $region8
    $region5: #{tpu_custom_call.1} parent=1 // loop_body
      %s22 = ssub.s32 %s17, 1
      %s23 = ssub.s32 %s17, 2
      %s24 = sadd.s32 %s17, 1
      %s25 = ssub.s32 %s17, %s24
      %p26 = scmp.eq.s32.totalorder %s25, 0
      %s28 = sadd.s32 %s27, 1
      %s29 = scalar_select %p26, %s27, %s28
      %p32 = pneg %p26
      %p33 = scmp.eq.s32.totalorder %s17, 1
      %p34 = por %p32, %p33
      %p35 = scmp.ne.s32.totalorder %s27, %s30
      %p36 = scmp.eq.s32.totalorder %s17, 0
      %p37 = por %p35, %p36
      %p38 = scmp.ne.s32.totalorder %s27, %s30
      %p39 = scmp.eq.s32.totalorder %s22, 1
      %p40 = por %p38, %p39
      %p41 = scmp.ne.s32.totalorder %s30, %s31
      %p42 = scmp.eq.s32.totalorder %s22, 0
      %p43 = por %p41, %p42
      %p44 = scmp.ne.s32.totalorder %s30, %s31
      %p45 = scmp.eq.s32.totalorder %s23, 1
      %p46 = por %p44, %p45
      %p48 = scmp.ne.s32.totalorder %s31, %s47
      %p49 = scmp.eq.s32.totalorder %s23, 0
      %p50 = por %p48, %p49
      %s52 = sadd.s32 %s51, 1
      %p55 = scmp.eq.s32.totalorder %s17, 1
      %p56 = scmp.ne.s32.totalorder %s51, %s53
      %p57 = scmp.eq.s32.totalorder %s17, 0
      %p58 = por %p56, %p57
      %p59 = scmp.ne.s32.totalorder %s51, %s53
      %p60 = scmp.eq.s32.totalorder %s22, 1
      %p61 = por %p59, %p60
      %p62 = scmp.ne.s32.totalorder %s53, %s54
      %p63 = scmp.eq.s32.totalorder %s22, 0
      %p64 = por %p62, %p63
      %p65 = scmp.ne.s32.totalorder %s53, %s54
      %p66 = scmp.eq.s32.totalorder %s23, 1
      %p67 = por %p65, %p66
      %p69 = scmp.ne.s32.totalorder %s54, %s68
      %p70 = scmp.eq.s32.totalorder %s23, 0
      %p71 = por %p69, %p70
      %s73 = sadd.s32 %s72, 1
      %p76 = scmp.eq.s32.totalorder %s17, 1
      %p77 = scmp.ne.s32.totalorder %s72, %s74
      %p78 = scmp.eq.s32.totalorder %s17, 0
      %p79 = por %p77, %p78
      %p80 = scmp.ne.s32.totalorder %s72, %s74
      %p81 = scmp.eq.s32.totalorder %s22, 1
      %p82 = por %p80, %p81
      %p83 = scmp.ne.s32.totalorder %s74, %s75
      %p84 = scmp.eq.s32.totalorder %s22, 0
      %p85 = por %p83, %p84
      %p86 = scmp.ne.s32.totalorder %s74, %s75
      %p87 = scmp.eq.s32.totalorder %s23, 1
      %p88 = por %p86, %p87
      %p90 = scmp.ne.s32.totalorder %s75, %s89
      %p91 = scmp.eq.s32.totalorder %s23, 0
      %p92 = por %p90, %p91
      %s94 = sadd.s32 %s93, 1
      %p97 = scmp.eq.s32.totalorder %s17, 1
      %p98 = scmp.ne.s32.totalorder %s93, %s95
      %p99 = scmp.eq.s32.totalorder %s17, 0
      %p100 = por %p98, %p99
      %p101 = scmp.ne.s32.totalorder %s93, %s95
      %p102 = scmp.eq.s32.totalorder %s22, 1
      %p103 = por %p101, %p102
      %p104 = scmp.ne.s32.totalorder %s95, %s96
      %p105 = scmp.eq.s32.totalorder %s22, 0
      %p106 = por %p104, %p105
      %p107 = scmp.ne.s32.totalorder %s95, %s96
      %p108 = scmp.eq.s32.totalorder %s23, 1
      %p109 = por %p107, %p108
      %p111 = scmp.ne.s32.totalorder %s96, %s110
      %p112 = scmp.eq.s32.totalorder %s23, 0
      %p113 = por %p111, %p112
      %s114 = ssub.s32 %s17, %s24
      %p115 = scmp.eq.s32.totalorder %s114, 0
      %s117 = sadd.s32 %s116, 1
      %s118 = scalar_select %p115, %s116, %s117
      %p121 = pneg %p115
      %p122 = scmp.eq.s32.totalorder %s17, 1
      %p123 = por %p121, %p122
      %p124 = scmp.ne.s32.totalorder %s116, %s119
      %p125 = scmp.eq.s32.totalorder %s17, 0
      %p126 = por %p124, %p125
      %p127 = scmp.ne.s32.totalorder %s116, %s119
      %p128 = scmp.eq.s32.totalorder %s22, 1
      %p129 = por %p127, %p128
      %p130 = scmp.ne.s32.totalorder %s119, %s120
      %p131 = scmp.eq.s32.totalorder %s22, 0
      %p132 = por %p130, %p131
      %p133 = scmp.ne.s32.totalorder %s119, %s120
      %p134 = scmp.eq.s32.totalorder %s23, 1
      %p135 = por %p133, %p134
      %p137 = scmp.ne.s32.totalorder %s120, %s136
      %p138 = scmp.eq.s32.totalorder %s23, 0
      %p139 = por %p137, %p138
      %p140 = scmp.le.s32.totalorder 1, %s17
      %p141 = scmp.lt.s32.totalorder %s17, 3
      %p142 = pnand %p140, %p141
      %p143 = pneg %p142
      // Predicated region
      $region9: #{tpu_custom_call.1} parent=5 // pred_check
        _
      $region10: #{tpu_custom_call.1} parent=5 // pred_check_branch
        %145 = sbr.rel (%p142) target = $region12
      $region11: #{tpu_custom_call.1} parent=5 // pred_region
        %s146 = ssub.s32 %s17, 1
        // Predicated region
        $region13: #{tpu_custom_call.1} parent=11 // pred_check
          %p147 = pneg %p64
        $region14: #{tpu_custom_call.1} parent=11 // pred_check_branch
          %149 = sbr.rel (%p147) target = $region16
        $region15: #{tpu_custom_call.1} parent=11 // pred_region
          %151 = vsyncadd [#allocation6], 0
          %s152 = sshll.u32 %s1, 4
          %s153 = int_to_ptr.hbm [resolvable:$true] %s152
          %s154 = sshll.u32 [#allocation5], 4
          %s155 = int_to_ptr.vmem [resolvable:$true] %s154
          %160 = dma.hbm_to_vmem [thread:$0]  %s153, 128, %s155, [#allocation6], 64, 64, 4
        $region16: #{tpu_custom_call.1} parent=11 // pred_fallthru
          _
        // Predicated region
        $region17: #{tpu_custom_call.1} parent=11 // pred_check
          %p161 = pneg %p85
        $region18: #{tpu_custom_call.1} parent=11 // pred_check_branch
          %163 = sbr.rel (%p161) target = $region20
        $region19: #{tpu_custom_call.1} parent=11 // pred_region
          _
        $region20: #{tpu_custom_call.1} parent=11 // pred_fallthru
          _
        // Predicated region
        $region21: #{tpu_custom_call.1} parent=11 // pred_check
          %p164 = pneg %p106
        $region22: #{tpu_custom_call.1} parent=11 // pred_check_branch
          %166 = sbr.rel (%p164) target = $region24
        $region23: #{tpu_custom_call.1} parent=11 // pred_region
          _
        $region24: #{tpu_custom_call.1} parent=11 // pred_fallthru
          _
      $region12: #{tpu_custom_call.1} parent=5 // pred_fallthru
        _
      %p167 = scmp.lt.s32.totalorder %s17, 2
      // Predicated region
      $region25: #{tpu_custom_call.1} parent=5 // pred_check
        %p168 = pneg %p167
      $region26: #{tpu_custom_call.1} parent=5 // pred_check_branch
        %170 = sbr.rel (%p168) target = $region28
      $region27: #{tpu_custom_call.1} parent=5 // pred_region
        // Predicated region
        $region29: #{tpu_custom_call.1} parent=27 // pred_check
          %p171 = pneg %p37
        $region30: #{tpu_custom_call.1} parent=27 // pred_check_branch
          %173 = sbr.rel (%p171) target = $region32
        $region31: #{tpu_custom_call.1} parent=27 // pred_region
          %s174 = sand.u32 %s27, 1
          %s175 = scalar_lea.sflag [#allocation3], %s174
          %s176 = sand.u32 %s27, 1
          %s177 = smul.addr %s176, 104
          %s178 = scalar_lea.vmem [#allocation2], %s177
          %180 = vsyncadd %s175, 0
          %s181 = smul.addr %s17, 4
          %s182 = scalar_lea.hbm %s0, %s181
          %s183 = sshll.u32 %s182, 4
          %s184 = int_to_ptr.hbm [resolvable:$true] %s183
          %s185 = sshll.u32 %s178, 4
          %s186 = int_to_ptr.vmem [resolvable:$true] %s185
          %191 = dma.hbm_to_vmem [thread:$0]  %s184, 1664, %s186, %s175, 128, 64, 4
        $region32: #{tpu_custom_call.1} parent=27 // pred_fallthru
          _
      $region28: #{tpu_custom_call.1} parent=5 // pred_fallthru
        _
      %p192 = scmp.le.s32.totalorder 1, %s17
      %p193 = scmp.lt.s32.totalorder %s17, 3
      %p194 = pnand %p192, %p193
      %p195 = pneg %p194
      // Predicated region
      $region33: #{tpu_custom_call.1} parent=5 // pred_check
        _
      $region34: #{tpu_custom_call.1} parent=5 // pred_check_branch
        %197 = sbr.rel (%p194) target = $region36
      $region35: #{tpu_custom_call.1} parent=5 // pred_region
        %s198 = ssub.s32 %s17, 1
        %s199 = sand.u32 %s30, 1
        %s200 = scalar_lea.sflag [#allocation3], %s199
        %s201 = sand.u32 %s30, 1
        %s202 = smul.addr %s201, 104
        %s203 = scalar_lea.vmem [#allocation2], %s202
        // Predicated region
        $region37: #{tpu_custom_call.1} parent=35 // pred_check
          %p204 = pneg %p43
        $region38: #{tpu_custom_call.1} parent=35 // pred_check_branch
          %206 = sbr.rel (%p204) target = $region40
        $region39: #{tpu_custom_call.1} parent=35 // pred_region
          %208 = dma.done %s200, 1664
        $region40: #{tpu_custom_call.1} parent=35 // pred_fallthru
          _
        // Predicated region
        $region41: #{tpu_custom_call.1} parent=35 // pred_check
          %p209 = pneg %p64
        $region42: #{tpu_custom_call.1} parent=35 // pred_check_branch
          %211 = sbr.rel (%p209) target = $region44
        $region43: #{tpu_custom_call.1} parent=35 // pred_region
          %213 = dma.done [#allocation6], 128
        $region44: #{tpu_custom_call.1} parent=35 // pred_fallthru
          _
        %s214 = sand.u32 %s30, 1
        %s215 = scalar_lea.sflag [#allocation3], %s214
        %s216 = sand.u32 %s30, 1
        %s217 = smul.addr %s216, 104
        %s218 = scalar_lea.vmem [#allocation2], %s217
        %p219 = pneg %p43
        %p220 = pneg %p40
        %p221 = pneg %p64
        %p222 = pneg %p61
        %p223 = pneg %p85
        %p224 = pneg %p82
        %p225 = pneg %p106
        %p226 = pneg %p103
        %p227 = pneg %p132
        %p228 = pneg %p129
        %s229 = sand.u32 %s119, 1
        %s230 = scalar_lea.sflag [#allocation4], %s229
        %s231 = sand.u32 %s119, 1
        %s232 = smul.addr %s231, 16
        %s233 = scalar_lea.vmem [#allocation7], %s232
        %v235 = vld [vmem:[%s203] sm:$0xf]
        %v236 = vld [vmem:[%s203 + $0x4] sm:$0xf]
        %v237 = vld [vmem:[%s203 + $0x8] sm:$0xf]
        %v238 = vld [vmem:[%s203 + $0xc] sm:$0xf]
        %v239 = vld [vmem:[%s203 + $0x10] sm:$0xf]
        %v240 = vld [vmem:[%s203 + $0x14] sm:$0xf]
        %v241 = vld [vmem:[%s203 + $0x18] sm:$0xf]
        %v242 = vld [vmem:[%s203 + $0x1c] sm:$0xf]
        %v243 = vld [vmem:[%s203 + $0x20] sm:$0xf]
        %v244 = vld [vmem:[%s203 + $0x24] sm:$0xf]
        %v245 = vld [vmem:[%s203 + $0x28] sm:$0xf]
        %v246 = vld [vmem:[%s203 + $0x2c] sm:$0xf]
        %v247 = vld [vmem:[%s203 + $0x30] sm:$0xf]
        %v248 = vld [vmem:[%s203 + $0x34] sm:$0xf]
        %v249 = vld [vmem:[%s203 + $0x38] sm:$0xf]
        %v250 = vld [vmem:[%s203 + $0x3c] sm:$0xf]
        %v251 = vld [vmem:[%s203 + $0x40] sm:$0xf]
        %v252 = vld [vmem:[%s203 + $0x44] sm:$0xf]
        %v253 = vld [vmem:[%s203 + $0x48] sm:$0xf]
        %v254 = vld [vmem:[%s203 + $0x4c] sm:$0xf]
        %v255 = vld [vmem:[%s203 + $0x50] sm:$0xf]
        %v256 = vld [vmem:[%s203 + $0x54] sm:$0xf]
        %v257 = vld [vmem:[%s203 + $0x58] sm:$0xf]
        %v258 = vld [vmem:[%s203 + $0x5c] sm:$0xf]
        %v259 = vld [vmem:[%s203 + $0x60] sm:$0xf]
        %v260 = vld [vmem:[%s203 + $0x64] sm:$0xf]
        %v261 = vld [vmem:[#allocation5] sm:$0xf]
        %v262 = vld [vmem:[#allocation5 + $0x4] sm:$0x1]
        %v265 = vunpack.c.l.b16 %v261
        %v266 = vunpack.c.l.b16 %v262
        %v267 = vpack.c.b16 %v266, %v265
        %v274 = vunpack.c.l.b16 %v235
        %v275 = vunpack.c.l.b16 %v236
        %v276 = vunpack.c.l.b16 %v237
        %v277 = vunpack.c.l.b16 %v238
        %v278 = vunpack.c.l.b16 %v239
        %v279 = vunpack.c.l.b16 %v240
        %v280 = vpack.c.b16 %v275, %v274
        %v281 = vpack.c.b16 %v277, %v276
        %v282 = vpack.c.b16 %v279, %v278
        %vm286 = vcmask 392192
        %v288 = vsel %vm286, %v267, 0
        %290 = vmatpush.bf16.msra.mxu0 0
        %291 = vmatpush.bf16.msra.mxu0 0
        %292 = vmatpush.bf16.msra.mxu0 0
        %293 = vmatpush.bf16.msra.mxu0 0
        %294 = vmatpush.bf16.msra.mxu0 0
        %295 = vmatpush.bf16.msra.mxu0 %v282
        %296 = vmatpush.bf16.msra.mxu0 %v281
        %297 = vmatpush.bf16.msra.mxu0 %v280
        %298 = vmatmul.bf16.gmra.mxu0 %v288
        %v299 = vpop.f32.mrf.mxu0
        %v300 = vadd.f32 0.0, %v299
        %v301 = vpop.f32.mrf.mxu0
        %v302 = vadd.f32 0.0, %v301
        %303 = vdwg.mxu0
        %v306 = vunpack.c.l.b16 %v241
        %v307 = vunpack.c.l.b16 %v242
        %v308 = vpack.c.b16 %v307, %v306
        %310 = vmatpush.bf16.msra.mxu0 0
        %311 = vmatpush.bf16.msra.mxu0 0
        %312 = vmatpush.bf16.msra.mxu0 0
        %313 = vmatpush.bf16.msra.mxu0 0
        %314 = vmatpush.bf16.msra.mxu0 0
        %315 = vmatpush.bf16.msra.mxu0 %v308
        %316 = vmatpush.bf16.msra.mxu0 %v282
        %317 = vmatpush.bf16.msra.mxu0 %v281
        %318 = vmatmul.bf16.gmra.mxu0 %v288
        %v319 = vpop.f32.mrf.mxu0
        %v320 = vadd.f32 0.0, %v319
        %v321 = vpop.f32.mrf.mxu0
        %v322 = vadd.f32 0.0, %v321
        %323 = vdwg.mxu0
        %v324 = vmax.f32 %v300, %v320
        %v325 = vmax.f32 %v302, %v322
        %v328 = vunpack.c.l.b16 %v243
        %v329 = vunpack.c.l.b16 %v244
        %v330 = vpack.c.b16 %v329, %v328
        %332 = vmatpush.bf16.msra.mxu0 0
        %333 = vmatpush.bf16.msra.mxu0 0
        %334 = vmatpush.bf16.msra.mxu0 0
        %335 = vmatpush.bf16.msra.mxu0 0
        %336 = vmatpush.bf16.msra.mxu0 0
        %337 = vmatpush.bf16.msra.mxu0 %v330
        %338 = vmatpush.bf16.msra.mxu0 %v308
        %339 = vmatpush.bf16.msra.mxu0 %v282
        %340 = vmatmul.bf16.gmra.mxu0 %v288
        %v341 = vpop.f32.mrf.mxu0
        %v342 = vadd.f32 0.0, %v341
        %v343 = vpop.f32.mrf.mxu0
        %v344 = vadd.f32 0.0, %v343
        %345 = vdwg.mxu0
        %v346 = vmax.f32 %v324, %v342
        %v347 = vmax.f32 %v325, %v344
        %v350 = vunpack.c.l.b16 %v245
        %v351 = vunpack.c.l.b16 %v246
        %v352 = vpack.c.b16 %v351, %v350
        %354 = vmatpush.bf16.msra.mxu0 0
        %355 = vmatpush.bf16.msra.mxu0 0
        %356 = vmatpush.bf16.msra.mxu0 0
        %357 = vmatpush.bf16.msra.mxu0 0
        %358 = vmatpush.bf16.msra.mxu0 0
        %359 = vmatpush.bf16.msra.mxu0 %v352
        %360 = vmatpush.bf16.msra.mxu0 %v330
        %361 = vmatpush.bf16.msra.mxu0 %v308
        %362 = vmatmul.bf16.gmra.mxu0 %v288
        %v363 = vpop.f32.mrf.mxu0
        %v364 = vadd.f32 0.0, %v363
        %v365 = vpop.f32.mrf.mxu0
        %v366 = vadd.f32 0.0, %v365
        %367 = vdwg.mxu0
        %v368 = vmax.f32 %v346, %v364
        %v369 = vmax.f32 %v347, %v366
        %v372 = vunpack.c.l.b16 %v247
        %v373 = vunpack.c.l.b16 %v248
        %v374 = vpack.c.b16 %v373, %v372
        %376 = vmatpush.bf16.msra.mxu0 0
        %377 = vmatpush.bf16.msra.mxu0 0
        %378 = vmatpush.bf16.msra.mxu0 0
        %379 = vmatpush.bf16.msra.mxu0 0
        %380 = vmatpush.bf16.msra.mxu0 0
        %381 = vmatpush.bf16.msra.mxu0 %v374
        %382 = vmatpush.bf16.msra.mxu0 %v352
        %383 = vmatpush.bf16.msra.mxu0 %v330
        %384 = vmatmul.bf16.gmra.mxu0 %v288
        %v385 = vpop.f32.mrf.mxu0
        %v386 = vadd.f32 0.0, %v385
        %v387 = vpop.f32.mrf.mxu0
        %v388 = vadd.f32 0.0, %v387
        %389 = vdwg.mxu0
        %v390 = vmax.f32 %v368, %v386
        %v391 = vmax.f32 %v369, %v388
        %v394 = vunpack.c.l.b16 %v249
        %v395 = vunpack.c.l.b16 %v250
        %v396 = vpack.c.b16 %v395, %v394
        %398 = vmatpush.bf16.msra.mxu0 0
        %399 = vmatpush.bf16.msra.mxu0 0
        %400 = vmatpush.bf16.msra.mxu0 0
        %401 = vmatpush.bf16.msra.mxu0 0
        %402 = vmatpush.bf16.msra.mxu0 0
        %403 = vmatpush.bf16.msra.mxu0 %v396
        %404 = vmatpush.bf16.msra.mxu0 %v374
        %405 = vmatpush.bf16.msra.mxu0 %v352
        %406 = vmatmul.bf16.gmra.mxu0 %v288
        %v407 = vpop.f32.mrf.mxu0
        %v408 = vadd.f32 0.0, %v407
        %v409 = vpop.f32.mrf.mxu0
        %v410 = vadd.f32 0.0, %v409
        %411 = vdwg.mxu0
        %v412 = vmax.f32 %v390, %v408
        %v413 = vmax.f32 %v391, %v410
        %v416 = vunpack.c.l.b16 %v251
        %v417 = vunpack.c.l.b16 %v252
        %v418 = vpack.c.b16 %v417, %v416
        %420 = vmatpush.bf16.msra.mxu0 0
        %421 = vmatpush.bf16.msra.mxu0 0
        %422 = vmatpush.bf16.msra.mxu0 0
        %423 = vmatpush.bf16.msra.mxu0 0
        %424 = vmatpush.bf16.msra.mxu0 0
        %425 = vmatpush.bf16.msra.mxu0 %v418
        %426 = vmatpush.bf16.msra.mxu0 %v396
        %427 = vmatpush.bf16.msra.mxu0 %v374
        %428 = vmatmul.bf16.gmra.mxu0 %v288
        %v429 = vpop.f32.mrf.mxu0
        %v430 = vadd.f32 0.0, %v429
        %v431 = vpop.f32.mrf.mxu0
        %v432 = vadd.f32 0.0, %v431
        %433 = vdwg.mxu0
        %v434 = vmax.f32 %v412, %v430
        %v435 = vmax.f32 %v413, %v432
        %v438 = vunpack.c.l.b16 %v253
        %v439 = vunpack.c.l.b16 %v254
        %v440 = vpack.c.b16 %v439, %v438
        %442 = vmatpush.bf16.msra.mxu0 0
        %443 = vmatpush.bf16.msra.mxu0 0
        %444 = vmatpush.bf16.msra.mxu0 0
        %445 = vmatpush.bf16.msra.mxu0 0
        %446 = vmatpush.bf16.msra.mxu0 0
        %447 = vmatpush.bf16.msra.mxu0 %v440
        %448 = vmatpush.bf16.msra.mxu0 %v418
        %449 = vmatpush.bf16.msra.mxu0 %v396
        %450 = vmatmul.bf16.gmra.mxu0 %v288
        %v451 = vpop.f32.mrf.mxu0
        %v452 = vadd.f32 0.0, %v451
        %v453 = vpop.f32.mrf.mxu0
        %v454 = vadd.f32 0.0, %v453
        %455 = vdwg.mxu0
        %v456 = vmax.f32 %v434, %v452
        %v457 = vmax.f32 %v435, %v454
        %v460 = vunpack.c.l.b16 %v255
        %v461 = vunpack.c.l.b16 %v256
        %v462 = vpack.c.b16 %v461, %v460
        %464 = vmatpush.bf16.msra.mxu0 0
        %465 = vmatpush.bf16.msra.mxu0 0
        %466 = vmatpush.bf16.msra.mxu0 0
        %467 = vmatpush.bf16.msra.mxu0 0
        %468 = vmatpush.bf16.msra.mxu0 0
        %469 = vmatpush.bf16.msra.mxu0 %v462
        %470 = vmatpush.bf16.msra.mxu0 %v440
        %471 = vmatpush.bf16.msra.mxu0 %v418
        %472 = vmatmul.bf16.gmra.mxu0 %v288
        %v473 = vpop.f32.mrf.mxu0
        %v474 = vadd.f32 0.0, %v473
        %v475 = vpop.f32.mrf.mxu0
        %v476 = vadd.f32 0.0, %v475
        %477 = vdwg.mxu0
        %v478 = vmax.f32 %v456, %v474
        %v479 = vmax.f32 %v457, %v476
        %v482 = vunpack.c.l.b16 %v257
        %v483 = vunpack.c.l.b16 %v258
        %v484 = vpack.c.b16 %v483, %v482
        %486 = vmatpush.bf16.msra.mxu0 0
        %487 = vmatpush.bf16.msra.mxu0 0
        %488 = vmatpush.bf16.msra.mxu0 0
        %489 = vmatpush.bf16.msra.mxu0 0
        %490 = vmatpush.bf16.msra.mxu0 0
        %491 = vmatpush.bf16.msra.mxu0 %v484
        %492 = vmatpush.bf16.msra.mxu0 %v462
        %493 = vmatpush.bf16.msra.mxu0 %v440
        %494 = vmatmul.bf16.gmra.mxu0 %v288
        %v495 = vpop.f32.mrf.mxu0
        %v496 = vadd.f32 0.0, %v495
        %v497 = vpop.f32.mrf.mxu0
        %v498 = vadd.f32 0.0, %v497
        %499 = vdwg.mxu0
        %v500 = vmax.f32 %v478, %v496
        %v501 = vmax.f32 %v479, %v498
        %v502 = vld [vmem:[%s2] sm:$0xff]
        %v503 = vld [vmem:[%s2 + $0x8] sm:$0x3]
        %505 = vset.pattern.permute.xlu0 10
        %506 = vperm.xlu0 %505, %v502
        %v507 = vpop.permute.xlu0 %506
        %510 = vset.pattern.permute.xlu0 10
        %511 = vperm.xlu0 %510, %v503
        %v512 = vpop.permute.xlu0 %511
        %v516 = vunpack.c.l.b16 %v259
        %v517 = vunpack.c.l.b16 %v260
        %v518 = vpack.c.b16 %v517, %v516
        %520 = vmatpush.bf16.msra.mxu0 0
        %521 = vmatpush.bf16.msra.mxu0 0
        %522 = vmatpush.bf16.msra.mxu0 0
        %523 = vmatpush.bf16.msra.mxu0 0
        %524 = vmatpush.bf16.msra.mxu0 0
        %525 = vmatpush.bf16.msra.mxu0 %v518
        %526 = vmatpush.bf16.msra.mxu0 %v484
        %527 = vmatpush.bf16.msra.mxu0 %v462
        %528 = vmatmul.bf16.gmra.mxu0 %v288
        %v529 = vpop.f32.mrf.mxu0
        %v530 = vadd.f32 %v507, %v529
        %v531 = vpop.f32.mrf.mxu0
        %v532 = vadd.f32 %v512, %v531
        %533 = vdwg.mxu0
        %v534 = vmax.f32 %v500, %v530
        %v535 = vmax.f32 %v501, %v532
        %v536 = vld [vmem:[%s3] sm:$0xff]
        %v537 = vld [vmem:[%s3 + $0x8] sm:$0x3]
        %539 = vset.pattern.permute.xlu0 0
        %540 = vperm.xlu0 %539, %v536
        %v541 = vpop.permute.xlu0 %540
        %544 = vset.pattern.permute.xlu0 0
        %545 = vperm.xlu0 %544, %v537
        %v546 = vpop.permute.xlu0 %545
        %v548 = vadd.f32 %v534, %v541
        %v549 = vadd.f32 %v535, %v546
        %v550 = vxor.u32 %v548, 2147483648
        %v551 = vxor.u32 %v549, 2147483648
        %v552 = vmul.f32 %v550, 1.442695
        %v553 = vpow.pop %v552
        %v554 = vmul.f32 %v551, 1.442695
        %v555 = vpow.pop %v554
        %v556 = vadd.f32 %v553, 1.0
        %v557 = vadd.f32 %v555, 1.0
        %v558 = vrcp.pop %v556
        %v559 = vmul.f32 %v556, %v558
        %v560 = vsub.f32 1.0, %v559
        %v561 = vmul.f32 %v558, %v560
        %v562 = vadd.f32 %v558, %v561
        %vm563 = vweird.f32 %v556
        %vm564 = vweird.f32 %v558
        %vm565 = vmor %vm563, %vm564
        %v566 = vsel %vm565, %v558, %v562
        %v567 = vand.u32 2147483647, %v556
        %vm568 = vcmp.eq.f32.partialorder %v567, 8.507059e+37
        %v569 = vand.u32 %v556, 2147483648
        %v570 = vor.u32 1.1754944e-38, %v569
        %v571 = vsel %vm568, %v570, %v566
        %v572 = vmul.f32 1.0, %v571
        %v573 = vrcp.pop %v557
        %v574 = vmul.f32 %v557, %v573
        %v575 = vsub.f32 1.0, %v574
        %v576 = vmul.f32 %v573, %v575
        %v577 = vadd.f32 %v573, %v576
        %vm578 = vweird.f32 %v557
        %vm579 = vweird.f32 %v573
        %vm580 = vmor %vm578, %vm579
        %v581 = vsel %vm580, %v573, %v577
        %v582 = vand.u32 2147483647, %v557
        %vm583 = vcmp.eq.f32.partialorder %v582, 8.507059e+37
        %v584 = vand.u32 %v557, 2147483648
        %v585 = vor.u32 1.1754944e-38, %v584
        %v586 = vsel %vm583, %v585, %v581
        %v587 = vmul.f32 1.0, %v586
        %588 = vst [vmem:[%s233] sm:$0xff] %v572
        %589 = vst [vmem:[%s233 + $0x8] sm:$0x3] %v587
        %s590 = sand.u32 %s119, 1
        %s591 = scalar_lea.sflag [#allocation4], %s590
        %s592 = sand.u32 %s119, 1
        %s593 = smul.addr %s592, 16
        %s594 = scalar_lea.vmem [#allocation7], %s593
        // Predicated region
        $region45: #{tpu_custom_call.1} parent=35 // pred_check
          %p595 = pneg %p129
        $region46: #{tpu_custom_call.1} parent=35 // pred_check_branch
          %597 = sbr.rel (%p595) target = $region48
        $region47: #{tpu_custom_call.1} parent=35 // pred_region
          %599 = vsyncadd %s591, 0
          %s600 = smul.addr %s22, 8
          %s601 = scalar_lea.hbm %s4, %s600
          %s602 = sshll.u32 %s594, 4
          %s603 = int_to_ptr.vmem [resolvable:$true] %s602
          %s604 = sshll.u32 %s601, 4
          %s605 = int_to_ptr.hbm [resolvable:$true] %s604
          %610 = dma.vmem_to_hbm [thread:$0]  %s603, 256, %s605, %s591, 128, 256, 8
        $region48: #{tpu_custom_call.1} parent=35 // pred_fallthru
          _
      $region36: #{tpu_custom_call.1} parent=5 // pred_fallthru
        _
      %p611 = scmp.le.s32.totalorder 2, %s17
      // Predicated region
      $region49: #{tpu_custom_call.1} parent=5 // pred_check
        %p612 = pneg %p611
      $region50: #{tpu_custom_call.1} parent=5 // pred_check_branch
        %614 = sbr.rel (%p612) target = $region52
      $region51: #{tpu_custom_call.1} parent=5 // pred_region
        %s615 = ssub.s32 %s17, 2
        // Predicated region
        $region53: #{tpu_custom_call.1} parent=51 // pred_check
          %p616 = pneg %p135
        $region54: #{tpu_custom_call.1} parent=51 // pred_check_branch
          %618 = sbr.rel (%p616) target = $region56
        $region55: #{tpu_custom_call.1} parent=51 // pred_region
          %s619 = sand.u32 %s120, 1
          %s620 = scalar_lea.sflag [#allocation4], %s619
          %s621 = sand.u32 %s120, 1
          %s622 = smul.addr %s621, 16
          %s623 = scalar_lea.vmem [#allocation7], %s622
          %625 = dma.done %s620, 256
        $region56: #{tpu_custom_call.1} parent=51 // pred_fallthru
          _
      $region52: #{tpu_custom_call.1} parent=5 // pred_fallthru
        _
    $region6: #{tpu_custom_call.1} parent=1 // loop_footer
      %s21 = sadd.s32 1, %s17
    $region7: #{tpu_custom_call.1} parent=1 // loop_footer_branch
      %16 = sbr.rel target = $region3
    $region8: #{tpu_custom_call.1} parent=1 // loop_exit
      _
    %626 = vsyncpa [#allocation3], 1
    %s627 = scalar_lea.sflag [#allocation3], 1
    %628 = vsyncpa %s627, 1
    %629 = vsyncpa [#allocation6], 1
    %630 = vsyncpa [#allocation4], 1
    %s631 = scalar_lea.sflag [#allocation4], 1
    %632 = vsyncpa %s631, 1

</llo_original>
